<compile_context>
chip_gen: v7x
topology: tpu7x:2x2x1
jax: 0.10.0
libtpu: 0.0.40
codegen_flags: <defaults>
</compile_context>

<pallas_src>
import functools

import jax
import jax.numpy as jnp
from jax.experimental import pallas as pl
from jax.experimental.pallas import tpu as pltpu


# ------------------------------ tiling helper -------------------------------

def _pick_tile(dim, target):
    """Largest of {target, dim} that tiles `dim`; full dim is always legal."""
    if dim <= target:
        return dim
    if dim % target == 0:
        return target
    return dim


# ------------------------------ LayerNorm kernel ----------------------------

def _layernorm_kernel(x_ref, g_ref, b_ref, o_ref, *, eps):
    x = x_ref[...]
    mean = jnp.mean(x, axis=-1, keepdims=True)
    xc = x - mean
    var = jnp.mean(xc * xc, axis=-1, keepdims=True)
    inv = jax.lax.rsqrt(var + eps)
    o_ref[...] = (xc * inv * g_ref[...] + b_ref[...]).astype(o_ref.dtype)


def layernorm(x, g, b, *, eps=1e-5, tm_target=256):
    """x: (M, C); g, b: (1, C) -> (M, C)."""
    M, C = x.shape
    tm = _pick_tile(M, tm_target)
    kern = functools.partial(_layernorm_kernel, eps=eps)
    return pl.pallas_call(
        kern,
        out_shape=jax.ShapeDtypeStruct((M, C), jnp.float32),
        grid=(M // tm,),
        in_specs=[
            pl.BlockSpec((tm, C), lambda i: (i, 0)),
            pl.BlockSpec((1, C), lambda i: (0, 0)),
            pl.BlockSpec((1, C), lambda i: (0, 0)),
        ],
        out_specs=pl.BlockSpec((tm, C), lambda i: (i, 0)),
        compiler_params=pltpu.CompilerParams(dimension_semantics=("parallel",)),
    )(x, g, b)


# ------------------------- tiled Linear (+bias/+res) -------------------------

def _linear_kernel(x_ref, w_ref, b_ref, o_ref, acc_ref):
    @pl.when(pl.program_id(2) == 0)
    def _():
        acc_ref[...] = jnp.zeros_like(acc_ref)

    acc_ref[...] += jnp.dot(x_ref[...], w_ref[...],
                            preferred_element_type=jnp.float32)

    @pl.when(pl.program_id(2) == pl.num_programs(2) - 1)
    def _():
        o_ref[...] = (acc_ref[...] + b_ref[...]).astype(o_ref.dtype)


def _linear_residual_kernel(x_ref, w_ref, b_ref, r_ref, o_ref, acc_ref):
    @pl.when(pl.program_id(2) == 0)
    def _():
        acc_ref[...] = jnp.zeros_like(acc_ref)

    acc_ref[...] += jnp.dot(x_ref[...], w_ref[...],
                            preferred_element_type=jnp.float32)

    @pl.when(pl.program_id(2) == pl.num_programs(2) - 1)
    def _():
        o_ref[...] = (acc_ref[...] + b_ref[...] + r_ref[...]).astype(o_ref.dtype)


def linear(x, w, b, residual=None, *, tm_target=256, tn_target=256, tk_target=512):
    """x: (M, K), w: (K, N), b: (1, N), residual: optional (M, N) -> (M, N)."""
    M, K = x.shape
    _, N = w.shape
    tm = _pick_tile(M, tm_target)
    tn = _pick_tile(N, tn_target)
    tk = _pick_tile(K, tk_target)
    grid = (M // tm, N // tn, K // tk)

    x_spec = pl.BlockSpec((tm, tk), lambda i, j, kk: (i, kk))
    w_spec = pl.BlockSpec((tk, tn), lambda i, j, kk: (kk, j))
    b_spec = pl.BlockSpec((1, tn), lambda i, j, kk: (0, j))
    o_spec = pl.BlockSpec((tm, tn), lambda i, j, kk: (i, j))
    scratch = [pltpu.VMEM((tm, tn), jnp.float32)]
    cparams = pltpu.CompilerParams(
        dimension_semantics=("parallel", "parallel", "arbitrary"))
    out_shape = jax.ShapeDtypeStruct((M, N), jnp.float32)

    if residual is None:
        return pl.pallas_call(
            _linear_kernel,
            out_shape=out_shape,
            grid=grid,
            in_specs=[x_spec, w_spec, b_spec],
            out_specs=o_spec,
            scratch_shapes=scratch,
            compiler_params=cparams,
        )(x, w, b)

    r_spec = pl.BlockSpec((tm, tn), lambda i, j, kk: (i, j))
    return pl.pallas_call(
        _linear_residual_kernel,
        out_shape=out_shape,
        grid=grid,
        in_specs=[x_spec, w_spec, b_spec, r_spec],
        out_specs=o_spec,
        scratch_shapes=scratch,
        compiler_params=cparams,
    )(x, w, b, residual)


# --------------------------- flash attention kernel --------------------------

def _flash_attn_kernel(q_ref, k_ref, v_ref, o_ref, m_sc, l_sc, acc_sc,
                       *, scale, tq, tk):
    qi = pl.program_id(2)
    ki = pl.program_id(3)

    @pl.when(ki == 0)
    def _():
        m_sc[...] = jnp.full_like(m_sc, -jnp.inf)
        l_sc[...] = jnp.zeros_like(l_sc)
        acc_sc[...] = jnp.zeros_like(acc_sc)

    # Skip kv blocks strictly above the causal diagonal (fully masked).
    @pl.when(ki * tk <= qi * tq + (tq - 1))
    def _():
        q = q_ref[0, 0]                                   # (tq, H)
        k = k_ref[0, 0]                                   # (tk, H)
        v = v_ref[0, 0]                                   # (tk, H)
        # scores: contract last axes directly (no in-kernel transpose of k)
        s = jax.lax.dot_general(q, k, (((1,), (1,)), ((), ())),
                                preferred_element_type=jnp.float32) * scale
        row = qi * tq + jax.lax.broadcasted_iota(jnp.int32, (tq, tk), 0)
        col = ki * tk + jax.lax.broadcasted_iota(jnp.int32, (tq, tk), 1)
        s = jnp.where(row >= col, s, jnp.float32(-1e30))  # in-kernel causal mask

        m_prev = m_sc[...]
        m_new = jnp.maximum(m_prev, jnp.max(s, axis=-1, keepdims=True))
        alpha = jnp.exp(m_prev - m_new)
        p = jnp.exp(s - m_new)                            # unnormalized probs
        l_sc[...] = alpha * l_sc[...] + jnp.sum(p, axis=-1, keepdims=True)
        acc_sc[...] = alpha * acc_sc[...] + jnp.dot(
            p, v, preferred_element_type=jnp.float32)
        m_sc[...] = m_new

    @pl.when(ki == pl.num_programs(3) - 1)
    def _():
        inv_l = pl.reciprocal(l_sc[...], approx=False)    # deferred normalization
        o_ref[0, 0] = (acc_sc[...] * inv_l).astype(o_ref.dtype)


def flash_attention(q, k, v, scale, *, tq_target=256, tk_target=256):
    """q, k, v: (B, n_heads, T, head_size) -> (B, n_heads, T, head_size)."""
    B, N, T, H = q.shape
    tq = _pick_tile(T, tq_target)
    tk = _pick_tile(T, tk_target)
    kern = functools.partial(_flash_attn_kernel, scale=scale, tq=tq, tk=tk)
    q_spec = pl.BlockSpec((1, 1, tq, H), lambda b, n, qi, ki: (b, n, qi, 0))
    kv_spec = pl.BlockSpec((1, 1, tk, H), lambda b, n, qi, ki: (b, n, ki, 0))
    return pl.pallas_call(
        kern,
        out_shape=jax.ShapeDtypeStruct((B, N, T, H), jnp.float32),
        grid=(B, N, T // tq, T // tk),
        in_specs=[q_spec, kv_spec, kv_spec],
        out_specs=pl.BlockSpec((1, 1, tq, H), lambda b, n, qi, ki: (b, n, qi, 0)),
        scratch_shapes=[
            pltpu.VMEM((tq, 1), jnp.float32),   # running max m
            pltpu.VMEM((tq, 1), jnp.float32),   # running sum l
            pltpu.VMEM((tq, H), jnp.float32),   # output accumulator
        ],
        compiler_params=pltpu.CompilerParams(
            dimension_semantics=("parallel", "parallel", "parallel", "arbitrary")),
    )(q, k, v)


# ------------------------------ model wrapper --------------------------------

def gpt2_model(ids, params, cfg):
    B, T = ids.shape
    C = cfg["embed_dim"]
    N = cfg["num_heads"]
    H = C // N
    scale = float(H) ** (-0.5)
    M = B * T

    # embeddings (token gather + positional); emb dropout = identity (eval)
    x = jnp.take(params["wte"], ids, axis=0) + params["wpe"][:T][None]

    for blk in params["blocks"]:
        xf = x.reshape(M, C)

        # --- attention sub-block: x = x + attn(ln_1(x)) ---
        h = layernorm(xf, blk["ln1_g"], blk["ln1_b"])
        qkv = linear(h, blk["w_attn"], blk["b_attn"])                 # (M, 3C)
        q, k, v = jnp.split(qkv.reshape(B, T, 3 * C), 3, axis=-1)

        # 'b t (h n) -> b n t h', n = num_heads (heads inner on channel axis)
        def split_heads(u):
            return u.reshape(B, T, H, N).transpose(0, 3, 1, 2)

        a = flash_attention(split_heads(q), split_heads(k), split_heads(v),
                            scale)                                     # (B,N,T,H)
        # TODO(synk): attn_dropout / resid_dropout / mlp_dropout are identity (eval mode).

        merged = a.transpose(0, 2, 1, 3).reshape(M, C)                 # 'b n t h -> b t (n h)'
        # c_proj with the residual add fused into the epilogue
        x = linear(merged, blk["w_proj"], blk["b_proj"], residual=xf).reshape(B, T, C)

        # --- MLP sub-block: x = x + mlp(ln_2(x)) ---
        xf = x.reshape(M, C)
        h2 = layernorm(xf, blk["ln2_g"], blk["ln2_b"])
        hidden = linear(h2, blk["w_fc"], blk["b_fc"])                  # (M, 4C)
        hidden = jax.nn.gelu(hidden, approximate=False)                # exact GELU (nn.GELU)
        x = linear(hidden, blk["w_proj2"], blk["b_proj2"], residual=xf).reshape(B, T, C)

    # final layernorm on the last token only (LN is per-row, so this matches
    # ln_f(x)[:, -1, :]), then tied lm_head (no bias).
    last = x[:, -1, :]                                                 # (B, C)
    last = layernorm(last, params["lnf_g"], params["lnf_b"])
    vocab = params["wte"].shape[0]
    zero_bias = jnp.zeros((1, vocab), jnp.float32)
    logits = linear(last, params["wte"].T, zero_bias)                  # (B, vocab)
    return logits[:, None, :]                                          # (B, 1, vocab)


# ---------------------------- pure-JAX reference ------------------------------

def _ln_ref(x, g, b, eps=1e-5):
    mean = x.mean(-1, keepdims=True)
    var = ((x - mean) ** 2).mean(-1, keepdims=True)
    return (x - mean) / jnp.sqrt(var + eps) * g[0] + b[0]


def gpt2_model_ref(ids, params, cfg):
    B, T = ids.shape
    C = cfg["embed_dim"]
    N = cfg["num_heads"]
    H = C // N
    scale = float(H) ** (-0.5)

    x = jnp.take(params["wte"], ids, axis=0) + params["wpe"][:T][None]
    for blk in params["blocks"]:
        h = _ln_ref(x, blk["ln1_g"], blk["ln1_b"])
        qkv = h @ blk["w_attn"] + blk["b_attn"][0]
        q, k, v = jnp.split(qkv, 3, axis=-1)
        sh = lambda u: u.reshape(B, T, H, N).transpose(0, 3, 1, 2)
        q, k, v = sh(q), sh(k), sh(v)
        s = jnp.einsum("bnth,bnsh->bnts", q, k) * scale
        mask = jnp.tril(jnp.ones((T, T)))
        s = jnp.where(mask[None, None] == 0, -jnp.inf, s)
        p = jax.nn.softmax(s, axis=-1)
        a = jnp.einsum("bnts,bnsh->bnth", p, v)
        a = a.transpose(0, 2, 1, 3).reshape(B, T, C)
        x = x + (a @ blk["w_proj"] + blk["b_proj"][0])
        h2 = _ln_ref(x, blk["ln2_g"], blk["ln2_b"])
        m = jax.nn.gelu(h2 @ blk["w_fc"] + blk["b_fc"][0], approximate=False)
        x = x + (m @ blk["w_proj2"] + blk["b_proj2"][0])
    x = _ln_ref(x, params["lnf_g"], params["lnf_b"])[:, -1:, :]
    return x @ params["wte"].T


# ------------------------------------ main ------------------------------------

if __name__ == "__main__":
    cfg = dict(vocab_size=64, seq_len=8, embed_dim=32, num_heads=4,
               depth=2, mlp_ratio=4)
    batch = 2
    T = cfg["seq_len"]
    C = cfg["embed_dim"]
    V = cfg["vocab_size"]
    F = cfg["mlp_ratio"] * C

    def nrm(k, shape, s=0.02):
        return s * jax.random.normal(k, shape, jnp.float32)

    key = jax.random.PRNGKey(0)
    key, k_ids, k_wte, k_wpe = jax.random.split(key, 4)
    ids = jax.random.randint(k_ids, (batch, T), 0, V)

    params = {
        "wte": nrm(k_wte, (V, C)),
        "wpe": nrm(k_wpe, (T, C)),
        "lnf_g": jnp.ones((1, C), jnp.float32),
        "lnf_b": jnp.zeros((1, C), jnp.float32),
        "blocks": [],
    }
    for _ in range(cfg["depth"]):
        key, k1, k2, k3, k4, k5, k6, k7, k8 = jax.random.split(key, 9)
        params["blocks"].append({
            "ln1_g": jnp.ones((1, C), jnp.float32),
            "ln1_b": jnp.zeros((1, C), jnp.float32),
            "w_attn": nrm(k1, (C, 3 * C)),
            "b_attn": nrm(k2, (1, 3 * C)),
            "w_proj": nrm(k3, (C, C)),
            "b_proj": nrm(k4, (1, C)),
            "ln2_g": jnp.ones((1, C), jnp.float32),
            "ln2_b": jnp.zeros((1, C), jnp.float32),
            "w_fc": nrm(k5, (C, F)),
            "b_fc": nrm(k6, (1, F)),
            "w_proj2": nrm(k7, (F, C)),
            "b_proj2": nrm(k8, (1, C)),
        })

    out = jax.block_until_ready(gpt2_model(ids, params, cfg))
    ref = jax.block_until_ready(gpt2_model_ref(ids, params, cfg))

    assert out.shape == (batch, 1, V), out.shape
    assert jnp.allclose(out, ref, atol=1e-4, rtol=1e-4), "mismatch vs reference"
    print("KERNEL_OK")
</pallas_src>

<mosaic_0001>
module attributes {stable_mosaic.version = 11 : i64} {
  func.func @_layernorm_kernel(%arg0: i32, %arg1: memref<16x32xf32, #tpu.memory_space<vmem>>, %arg2: memref<1x32xf32, #tpu.memory_space<vmem>>, %arg3: memref<1x32xf32, #tpu.memory_space<vmem>>, %arg4: memref<16x32xf32, #tpu.memory_space<vmem>>) attributes {dimension_semantics = [#tpu.dimension_semantics<parallel>], iteration_bounds = array<i64: 1>, scalar_prefetch = 0 : i64, scratch_operands = 0 : i64, tpu.core_type = #tpu.core_type<tc>, window_params = [{transform_indices = @transform_0, window_bounds = array<i64: 16, 32>}, {pipeline_mode = #tpu.pipeline_mode<synchronous>, transform_indices = @transform_1, window_bounds = array<i64: 1, 32>}, {pipeline_mode = #tpu.pipeline_mode<synchronous>, transform_indices = @transform_2, window_bounds = array<i64: 1, 32>}, {transform_indices = @transform_3, window_bounds = array<i64: 16, 32>}]} {
    %c0 = arith.constant 0 : index
    %c0_0 = arith.constant 0 : index
    %0 = vector.load %arg1[%c0, %c0_0] : memref<16x32xf32, #tpu.memory_space<vmem>>, vector<16x32xf32>
    %cst = arith.constant dense<0.000000e+00> : vector<16xf32>
    %1 = vector.multi_reduction <add>, %0, %cst [1] : vector<16x32xf32> to vector<16xf32>
    %2 = vector.shape_cast %1 : vector<16xf32> to vector<16x1xf32>
    %cst_1 = arith.constant 3.200000e+01 : f32
    %3 = vector.broadcast %cst_1 : f32 to vector<16x1xf32>
    %4 = arith.divf %2, %3 : vector<16x1xf32>
    %5 = vector.broadcast %4 : vector<16x1xf32> to vector<16x32xf32>
    %6 = arith.subf %0, %5 : vector<16x32xf32>
    %7 = arith.mulf %6, %6 : vector<16x32xf32>
    %cst_2 = arith.constant dense<0.000000e+00> : vector<16xf32>
    %8 = vector.multi_reduction <add>, %7, %cst_2 [1] : vector<16x32xf32> to vector<16xf32>
    %9 = vector.shape_cast %8 : vector<16xf32> to vector<16x1xf32>
    %cst_3 = arith.constant 3.200000e+01 : f32
    %10 = vector.broadcast %cst_3 : f32 to vector<16x1xf32>
    %11 = arith.divf %9, %10 : vector<16x1xf32>
    %cst_4 = arith.constant 9.99999974E-6 : f32
    %12 = vector.broadcast %cst_4 : f32 to vector<16x1xf32>
    %13 = arith.addf %11, %12 : vector<16x1xf32>
    %14 = math.rsqrt %13 : vector<16x1xf32>
    %15 = vector.broadcast %14 : vector<16x1xf32> to vector<16x32xf32>
    %16 = arith.mulf %6, %15 : vector<16x32xf32>
    %c0_5 = arith.constant 0 : index
    %c0_6 = arith.constant 0 : index
    %17 = vector.load %arg2[%c0_5, %c0_6] : memref<1x32xf32, #tpu.memory_space<vmem>>, vector<1x32xf32>
    %18 = vector.broadcast %17 : vector<1x32xf32> to vector<16x32xf32>
    %19 = arith.mulf %16, %18 : vector<16x32xf32>
    %c0_7 = arith.constant 0 : index
    %c0_8 = arith.constant 0 : index
    %20 = vector.load %arg3[%c0_7, %c0_8] : memref<1x32xf32, #tpu.memory_space<vmem>>, vector<1x32xf32>
    %21 = vector.broadcast %20 : vector<1x32xf32> to vector<16x32xf32>
    %22 = arith.addf %19, %21 : vector<16x32xf32>
    %c0_9 = arith.constant 0 : index
    %c0_10 = arith.constant 0 : index
    %23 = vector.load %arg4[%c0_9, %c0_10] : memref<16x32xf32, #tpu.memory_space<vmem>>, vector<16x32xf32>
    tpu.vector_store %arg4[%c0_9, %c0_10], %22 {strides = array<i32>} : memref<16x32xf32, #tpu.memory_space<vmem>>, vector<16x32xf32>,
    return
  }
  func.func @transform_0(%arg0: i32) -> (i32, i32) {
    %c0_i32 = arith.constant 0 : i32
    %c0_i32_0 = arith.constant 0 : i32
    return %arg0, %c0_i32 : i32, i32
  }
  func.func @transform_1(%arg0: i32) -> (i32, i32) {
    %c0_i32 = arith.constant 0 : i32
    %c0_i32_0 = arith.constant 0 : i32
    %c0_i32_1 = arith.constant 0 : i32
    return %c0_i32, %c0_i32_0 : i32, i32
  }
  func.func @transform_2(%arg0: i32) -> (i32, i32) {
    %c0_i32 = arith.constant 0 : i32
    %c0_i32_0 = arith.constant 0 : i32
    %c0_i32_1 = arith.constant 0 : i32
    return %c0_i32, %c0_i32_0 : i32, i32
  }
  func.func @transform_3(%arg0: i32) -> (i32, i32) {
    %c0_i32 = arith.constant 0 : i32
    %c0_i32_0 = arith.constant 0 : i32
    return %arg0, %c0_i32 : i32, i32
  }
}

</mosaic_0001>

<llo_original>
// kernel: tpu_custom_call.1
$region0: #{tpu_custom_call.1}
  #allocation0 [shape = 'u32[]', space=smem, size = 0x4, offset = 0x4, fixed_abs, tag = 'smem constant byte address 0x4 - core index']
  #allocation1 [shape = 'u32[144,128]{1,0:T(1,128)}', space=vmem, size = 0x12000, scoped, tag = 'internal scratch']
  %s0 = inlined_call_operand.hbm [shape: f32[16,32], index: 0, kind: input, shape index: {}]
  %s1 = inlined_call_operand.vmem [shape: f32[1,32], index: 1, kind: input, shape index: {}]
  %s2 = inlined_call_operand.vmem [shape: f32[1,32], index: 2, kind: input, shape index: {}]
  %s3 = inlined_call_operand.hbm [shape: f32[16,32], index: 3, kind: output, shape index: {}]
  %s4 = sld [smem:[#allocation0]]
  $region26: #{tpu_custom_call.1} parent=0
    _
  %s6 = ssub.s32 1, %s4
  %s7 = scalar_select 0, %s6, %s4
  $region1: #{tpu_custom_call.1} parent=0
    #allocation2 [shape = 'u8[8192]{0}', space=vmem, size = 0x2000, scoped, tag = 'input window, operand 0, single buffered']
    #allocation3 [shape = 's32[1]{0}', space=sflag, size = 0x4, scoped, tag = 'scoped memory for tpu_custom_call.1']
    #allocation4 [shape = 's32[1]{0}', space=sflag, size = 0x4, scoped, tag = 'scoped memory for tpu_custom_call.1']
    #allocation5 [shape = 'u8[8192]{0}', space=vmem, size = 0x2000, scoped, tag = 'output window, operand 0, single buffered']
    %8 = vsyncpa [#allocation3], 0
    %9 = vsyncpa [#allocation4], 0
    // Predicated region
    $region2: #{tpu_custom_call.1} parent=1 // pred_check
      _
    $region3: #{tpu_custom_call.1} parent=1 // pred_check_branch
      %11 = sbr.rel (0) target = $region5
    $region4: #{tpu_custom_call.1} parent=1 // pred_region
      %s13 = ssub.s32 256, 256
      %14 = vsyncadd [#allocation3], %s13
      %s15 = sshll.u32 [#allocation2], 4
      %s16 = int_to_ptr.vmem [resolvable:$true] %s15
      %21 = dma.hbm_to_vmem [thread:$0]  %s0, 256, %s16, [#allocation3], 128, 128, 8
    $region5: #{tpu_custom_call.1} parent=1 // pred_fallthru
      _
    // Predicated region
    $region6: #{tpu_custom_call.1} parent=1 // pred_check
      _
    $region7: #{tpu_custom_call.1} parent=1 // pred_check_branch
      %23 = sbr.rel (0) target = $region9
    $region8: #{tpu_custom_call.1} parent=1 // pred_region
      _
    $region9: #{tpu_custom_call.1} parent=1 // pred_fallthru
      _
    // Predicated region
    $region10: #{tpu_custom_call.1} parent=1 // pred_check
      _
    $region11: #{tpu_custom_call.1} parent=1 // pred_check_branch
      %25 = sbr.rel (0) target = $region13
    $region12: #{tpu_custom_call.1} parent=1 // pred_region
      _
    $region13: #{tpu_custom_call.1} parent=1 // pred_fallthru
      _
    // Predicated region
    $region14: #{tpu_custom_call.1} parent=1 // pred_check
      _
    $region15: #{tpu_custom_call.1} parent=1 // pred_check_branch
      %27 = sbr.rel (0) target = $region17
    $region16: #{tpu_custom_call.1} parent=1 // pred_region
      %28 = dma.done [#allocation3], 256
    $region17: #{tpu_custom_call.1} parent=1 // pred_fallthru
      _
    %v29 = vld [vmem:[#allocation2] sm:$0xff]
    %v30 = vld [vmem:[#allocation2 + $0x8] sm:$0xff]
    %vm31 = vcmask 261120
    %v32 = vsel %vm31, %v29, 0.0
    %33 = vadd.xlane.f32.xlu0 %v32
    %v34 = vpop.xlane.xlu0 %33
    %v35 = vsel %vm31, %v30, 0.0
    %36 = vadd.xlane.f32.xlu0 %v35
    %v37 = vpop.xlane.xlu0 %36
    %v38 = vrcp.pop 32.0
    %v39 = vmul.f32 %v34, %v38
    %v40 = vmul.f32 %v37, %v38
    %v41 = vsub.f32 %v29, %v39
    %v42 = vsub.f32 %v30, %v40
    %v43 = vmul.f32 %v41, %v41
    %v44 = vmul.f32 %v42, %v42
    %v45 = vsel %vm31, %v43, 0.0
    %46 = vadd.xlane.f32.xlu0 %v45
    %v47 = vpop.xlane.xlu0 %46
    %v48 = vsel %vm31, %v44, 0.0
    %49 = vadd.xlane.f32.xlu0 %v48
    %v50 = vpop.xlane.xlu0 %49
    %v51 = vmul.f32 %v47, %v38
    %v52 = vmul.f32 %v50, %v38
    %v53 = vadd.f32 %v51, 1e-05
    %v54 = vadd.f32 %v52, 1e-05
    %v55 = vrsqrt.pop %v53
    %v56 = vrsqrt.pop %v54
    %v57 = vmul.f32 %v41, %v55
    %v58 = vmul.f32 %v42, %v56
    %v59 = vld [vmem:[%s1] sm:$0x1]
    %v61 = vlaneseq
    %v62 = vshrl.u32 %v61, 7
    %v63 = vsub.s32 0, %v62
    %v64 = vrot.slane %v59, %v63
    %v66 = vmul.f32 %v57, %v64
    %v67 = vmul.f32 %v58, %v64
    %v68 = vld [vmem:[%s2] sm:$0x1]
    %v70 = vlaneseq
    %v71 = vshrl.u32 %v70, 7
    %v72 = vsub.s32 0, %v71
    %v73 = vrot.slane %v68, %v72
    %v75 = vadd.f32 %v66, %v73
    %v76 = vadd.f32 %v67, %v73
    %77 = vst.msk [vmem:[#allocation5] sm:$0xff] %vm31, %v75
    %78 = vst.msk [vmem:[#allocation5 + $0x8] sm:$0xff] %vm31, %v76
    // Predicated region
    $region18: #{tpu_custom_call.1} parent=1 // pred_check
      _
    $region19: #{tpu_custom_call.1} parent=1 // pred_check_branch
      %80 = sbr.rel (0) target = $region21
    $region20: #{tpu_custom_call.1} parent=1 // pred_region
      %s82 = ssub.s32 256, 256
      %83 = vsyncadd [#allocation4], %s82
      %s84 = sshll.u32 [#allocation5], 4
      %s85 = int_to_ptr.vmem [resolvable:$true] %s84
      %90 = dma.vmem_to_hbm [thread:$0]  %s85, 256, %s3, [#allocation4], 128, 128, 8
    $region21: #{tpu_custom_call.1} parent=1 // pred_fallthru
      _
    // Predicated region
    $region22: #{tpu_custom_call.1} parent=1 // pred_check
      _
    $region23: #{tpu_custom_call.1} parent=1 // pred_check_branch
      %92 = sbr.rel (0) target = $region25
    $region24: #{tpu_custom_call.1} parent=1 // pred_region
      %93 = dma.done [#allocation4], 256
    $region25: #{tpu_custom_call.1} parent=1 // pred_fallthru
      _
    %94 = vsyncpa [#allocation3], 1
    %95 = vsyncpa [#allocation4], 1

</llo_original>
